<compile_context>
chip_gen: v6e
topology: v6e:2x2x1
jax: 0.10.0
libtpu: 0.0.40
codegen_flags: <defaults>
</compile_context>

<pallas_src>
import functools

import jax
import jax.numpy as jnp
from jax.experimental import pallas as pl
from jax.experimental.pallas import tpu as pltpu


# ----------------------------- Pallas kernel --------------------------------
def _pe2d_kernel(x_ref, pos_ref, w1p_ref, b1p_ref, w2a_ref, out_ref, *,
                 channels, inv_hw):
    C = channels
    x = x_ref[...]                                     # (C, HWp) f32, lane-dense

    # --- AdaptiveAvgPool2d(1): one cross-lane reduce (XLU slot) --------------
    # Zero-padded spatial columns do not perturb the sum; divide by true H*W.
    pooled = jnp.sum(x, axis=-1, keepdims=True) * inv_hw            # (C, 1)

    # --- fused h/w scale MLPs on VPU + XLU (no N=1 MXU matvecs) --------------
    # Layer 1, both branches: w1p = [W1h^T | 0 | W1w^T | 0]  (C, 2C+2).
    # Broadcast-multiply by the pooled column, sublane-reduce -> (1, 2C+2) row.
    h1 = jnp.sum(w1p_ref[...] * pooled, axis=0, keepdims=True)      # (1, 2C+2)
    # Lane-dense bias row; lanes C and 2C+1 hold 1.0 -> ReLU keeps the
    # constant-1 lane that multiplies the folded layer-2 bias column.
    h1 = jnp.maximum(h1 + b1p_ref[...], 0.0)                        # (1, 2C+2)

    # Layer 2, per branch: (C, C+1) weights with bias as last column.
    # Broadcast-multiply by the (1, C+1) hidden row, lane-reduce -> (C, 1).
    h1h = h1[:, : C + 1]                                            # (1, C+1)
    h1w = h1[:, C + 1:]                                             # (1, C+1)
    s_h = jax.nn.sigmoid(jnp.sum(w2a_ref[0] * h1h, axis=-1, keepdims=True))
    s_w = jax.nn.sigmoid(jnp.sum(w2a_ref[1] * h1w, axis=-1, keepdims=True))
    scale = s_h + s_w                                               # (C, 1)

    # --- fused elementwise: out = x + (h_scale + w_scale) * pos --------------
    out_ref[...] = x + scale * pos_ref[...]


# ------------------------------ wrapper --------------------------------------
def positional_encoding_2d(x, pos, scale_params):
    B, C, H, W = x.shape
    HW = H * W
    HWp = ((HW + 127) // 128) * 128          # guarantee a lane-dense last axis
    w1h, b1h, w2h, b2h, w1w, b1w, w2w, b2w = scale_params   # b* are (C, 1)

    f32 = jnp.float32
    zero_col = jnp.zeros((C, 1), f32)
    one_lane = jnp.ones((1, 1), f32)

    # --- trace-time parameter packing (runs once, outside the hot loop) ------
    # layer 1: transposed, h/w stacked along lanes, one zero "bias lane" each.
    w1p = jnp.concatenate([w1h.T, zero_col, w1w.T, zero_col], axis=1).astype(f32)
    # layer-1 bias row (lane-dense): [b1h, 1, b1w, 1] -> (1, 2C+2)
    b1p = jnp.concatenate([b1h.T, one_lane, b1w.T, one_lane], axis=1).astype(f32)
    # layer 2: (2, C, C+1) = stack of [W2h | b2h], [W2w | b2w]  (no zeros block)
    w2a = jnp.stack([jnp.concatenate([w2h, b2h], axis=1),
                     jnp.concatenate([w2w, b2w], axis=1)], axis=0).astype(f32)

    # --- lane-dense layout: flatten spatial, zero-pad to a multiple of 128 ---
    x_flat = x.reshape(B, C, HW)
    pos_flat = pos.reshape(C, HW)
    if HWp != HW:
        x_flat = jnp.pad(x_flat, ((0, 0), (0, 0), (0, HWp - HW)))
        pos_flat = jnp.pad(pos_flat, ((0, 0), (0, HWp - HW)))

    cost = pl.CostEstimate(
        flops=B * (2 * C * (2 * C + 2) + 2 * 2 * C * (C + 1) + 3 * C * HWp),
        transcendentals=B * 2 * C,
        bytes_accessed=(2 * B * C * HWp + C * HWp
                        + w1p.size + b1p.size + w2a.size) * 4,
    )

    kernel = functools.partial(_pe2d_kernel, channels=C, inv_hw=1.0 / HW)

    grid_spec = pltpu.PrefetchScalarGridSpec(
        num_scalar_prefetch=0,
        grid=(B,),
        in_specs=[
            # per-batch slice of x (batch axis squeezed out of the kernel ref)
            pl.BlockSpec((pl.Squeezed(), C, HWp), lambda b: (b, 0, 0)),
            # grid-constant inputs: single-buffered (never refetched)
            pl.BlockSpec((C, HWp), lambda b: (0, 0),
                         pipeline_mode=pl.Buffered(buffer_count=1)),
            pl.BlockSpec((C, 2 * C + 2), lambda b: (0, 0),
                         pipeline_mode=pl.Buffered(buffer_count=1)),
            pl.BlockSpec((1, 2 * C + 2), lambda b: (0, 0),
                         pipeline_mode=pl.Buffered(buffer_count=1)),
            pl.BlockSpec((2, C, C + 1), lambda b: (0, 0, 0),
                         pipeline_mode=pl.Buffered(buffer_count=1)),
        ],
        out_specs=pl.BlockSpec((pl.Squeezed(), C, HWp), lambda b: (b, 0, 0)),
    )

    out_flat = pl.pallas_call(
        kernel,
        out_shape=jax.ShapeDtypeStruct((B, C, HWp), x.dtype),
        grid_spec=grid_spec,
        compiler_params=pltpu.CompilerParams(
            dimension_semantics=("parallel",),
            vmem_limit_bytes=48 * 1024 * 1024,   # headroom for real SATRN shapes
        ),
        cost_estimate=cost,
    )(x_flat, pos_flat, w1p, b1p, w2a)

    if HWp != HW:
        out_flat = out_flat[..., :HW]
    return out_flat.reshape(B, C, H, W)


# -------------------- positional-encoding construction (glue) ----------------
def generate_encoder(in_channels, max_len):
    pos = jnp.arange(max_len, dtype=jnp.float32)[:, None]
    i = jnp.arange(in_channels, dtype=jnp.float32)[None, :]
    angle_rates = 1.0 / jnp.power(10000.0, 2.0 * jnp.floor(i / 2.0) / in_channels)
    pe = pos * angle_rates
    even = (jnp.arange(in_channels) % 2 == 0)[None, :]
    return jnp.where(even, jnp.sin(pe), jnp.cos(pe))          # (max_len, in_channels)


def build_pos_encoding(H, W, C, max_h, max_w, wh_lin, bh_lin, ww_lin, bw_lin):
    half = C // 2
    h_pe = generate_encoder(half, max_h)[:H]                   # (H, C//2)
    w_pe = generate_encoder(half, max_w)[:W]                   # (W, C//2)
    h_pos = h_pe @ wh_lin.T + bh_lin                           # h_linear
    w_pos = w_pe @ ww_lin.T + bw_lin                           # w_linear
    pos = jnp.concatenate(
        [jnp.broadcast_to(h_pos[:, None, :], (H, W, half)),    # expand over W
         jnp.broadcast_to(w_pos[None, :, :], (H, W, half))],   # expand over H
        axis=2)                                                # cat dim=2 -> (H, W, C)
    return jnp.transpose(pos, (2, 0, 1)).astype(jnp.float32)   # permute(2,0,1) -> (C, H, W)


# ------------------------------ reference ------------------------------------
def reference(x, pos, scale_params):
    w1h, b1h, w2h, b2h, w1w, b1w, w2w, b2w = scale_params
    pooled = jnp.mean(x, axis=(2, 3))                          # (B, C)

    def mlp(p, w1, b1, w2, b2):
        h = jnp.maximum(p @ w1.T + b1[:, 0], 0.0)
        return jax.nn.sigmoid(h @ w2.T + b2[:, 0])

    s = mlp(pooled, w1h, b1h, w2h, b2h) + mlp(pooled, w1w, b1w, w2w, b2w)
    return x + s[:, :, None, None] * pos[None]


# -------------------------------- main ----------------------------------------
if __name__ == "__main__":
    B, C, H, W = 2, 32, 16, 16
    MAX_H, MAX_W = 64, 128
    half = C // 2

    key = jax.random.PRNGKey(0)
    ks = jax.random.split(key, 13)

    x = jax.random.normal(ks[0], (B, C, H, W), jnp.float32)

    # h_linear / w_linear : nn.Linear(C//2, C//2)
    wh_lin = 0.1 * jax.random.normal(ks[1], (half, half), jnp.float32)
    bh_lin = 0.01 * jax.random.normal(ks[2], (half,), jnp.float32)
    ww_lin = 0.1 * jax.random.normal(ks[3], (half, half), jnp.float32)
    bw_lin = 0.01 * jax.random.normal(ks[4], (half,), jnp.float32)

    # scale-factor 1x1 convs stored as dense (C, C) matrices (= weight[:, :, 0, 0])
    w1h = 0.1 * jax.random.normal(ks[5], (C, C), jnp.float32)
    b1h = 0.01 * jax.random.normal(ks[6], (C, 1), jnp.float32)
    w2h = 0.1 * jax.random.normal(ks[7], (C, C), jnp.float32)
    b2h = 0.01 * jax.random.normal(ks[8], (C, 1), jnp.float32)
    w1w = 0.1 * jax.random.normal(ks[9], (C, C), jnp.float32)
    b1w = 0.01 * jax.random.normal(ks[10], (C, 1), jnp.float32)
    w2w = 0.1 * jax.random.normal(ks[11], (C, C), jnp.float32)
    b2w = 0.01 * jax.random.normal(ks[12], (C, 1), jnp.float32)
    scale_params = (w1h, b1h, w2h, b2h, w1w, b1w, w2w, b2w)

    pos = build_pos_encoding(H, W, C, MAX_H, MAX_W, wh_lin, bh_lin, ww_lin, bw_lin)

    out = positional_encoding_2d(x, pos, scale_params)
    out = jax.block_until_ready(out)

    ref = reference(x, pos, scale_params)
    assert out.shape == (B, C, H, W) and out.dtype == jnp.float32
    max_err = float(jnp.max(jnp.abs(out - ref)))
    assert jnp.allclose(out, ref, atol=1e-4, rtol=1e-4), f"max_err={max_err}"
    print("KERNEL_OK")
</pallas_src>

<mosaic_0001>
module attributes {stable_mosaic.version = 11 : i64} {
  func.func @_pe2d_kernel(%arg0: i32, %arg1: memref<1x32x256xf32, #tpu.memory_space<vmem>>, %arg2: memref<32x256xf32, #tpu.memory_space<vmem>>, %arg3: memref<32x66xf32, #tpu.memory_space<vmem>>, %arg4: memref<1x66xf32, #tpu.memory_space<vmem>>, %arg5: memref<2x32x33xf32, #tpu.memory_space<vmem>>, %arg6: memref<1x32x256xf32, #tpu.memory_space<vmem>>) attributes {dimension_semantics = [#tpu.dimension_semantics<parallel>], iteration_bounds = array<i64: 2>, scalar_prefetch = 0 : i64, scratch_operands = 0 : i64, tpu.core_type = #tpu.core_type<tc>, window_params = [{transform_indices = @transform_0, window_bounds = array<i64: 1, 32, 256>}, {pipeline_mode = #tpu.pipeline_mode<synchronous>, transform_indices = @transform_1, window_bounds = array<i64: 32, 256>}, {pipeline_mode = #tpu.pipeline_mode<synchronous>, transform_indices = @transform_2, window_bounds = array<i64: 32, 66>}, {pipeline_mode = #tpu.pipeline_mode<synchronous>, transform_indices = @transform_3, window_bounds = array<i64: 1, 66>}, {pipeline_mode = #tpu.pipeline_mode<synchronous>, transform_indices = @transform_4, window_bounds = array<i64: 2, 32, 33>}, {transform_indices = @transform_5, window_bounds = array<i64: 1, 32, 256>}]} {
    %c0 = arith.constant 0 : index
    %c0_0 = arith.constant 0 : index
    %c0_1 = arith.constant 0 : index
    %0 = vector.load %arg1[%c0, %c0_0, %c0_1] : memref<1x32x256xf32, #tpu.memory_space<vmem>>, vector<1x32x256xf32>
    %1 = vector.shape_cast %0 : vector<1x32x256xf32> to vector<32x256xf32>
    %cst = arith.constant dense<0.000000e+00> : vector<32xf32>
    %2 = vector.multi_reduction <add>, %1, %cst [1] : vector<32x256xf32> to vector<32xf32>
    %3 = vector.shape_cast %2 : vector<32xf32> to vector<32x1xf32>
    %cst_2 = arith.constant 3.906250e-03 : f32
    %4 = vector.broadcast %cst_2 : f32 to vector<32x1xf32>
    %5 = arith.mulf %3, %4 : vector<32x1xf32>
    %c0_3 = arith.constant 0 : index
    %c0_4 = arith.constant 0 : index
    %6 = vector.load %arg3[%c0_3, %c0_4] : memref<32x66xf32, #tpu.memory_space<vmem>>, vector<32x66xf32>
    %7 = vector.broadcast %5 : vector<32x1xf32> to vector<32x66xf32>
    %8 = arith.mulf %6, %7 : vector<32x66xf32>
    %cst_5 = arith.constant dense<0.000000e+00> : vector<66xf32>
    %9 = vector.multi_reduction <add>, %8, %cst_5 [0] : vector<32x66xf32> to vector<66xf32>
    %10 = vector.shape_cast %9 : vector<66xf32> to vector<1x66xf32>
    %c0_6 = arith.constant 0 : index
    %c0_7 = arith.constant 0 : index
    %11 = vector.load %arg4[%c0_6, %c0_7] : memref<1x66xf32, #tpu.memory_space<vmem>>, vector<1x66xf32>
    %12 = arith.addf %10, %11 : vector<1x66xf32>
    %cst_8 = arith.constant 0.000000e+00 : f32
    %13 = vector.broadcast %cst_8 : f32 to vector<1x66xf32>
    %14 = arith.maximumf %12, %13 : vector<1x66xf32>
    %15 = vector.extract_strided_slice %14 {offsets = [0, 0], sizes = [1, 33], strides = [1, 1]} : vector<1x66xf32> to vector<1x33xf32>
    %16 = vector.extract_strided_slice %14 {offsets = [0, 33], sizes = [1, 33], strides = [1, 1]} : vector<1x66xf32> to vector<1x33xf32>
    %c0_9 = arith.constant 0 : index
    %c0_10 = arith.constant 0 : index
    %c0_11 = arith.constant 0 : index
    %17 = vector.load %arg5[%c0_9, %c0_10, %c0_11] : memref<2x32x33xf32, #tpu.memory_space<vmem>>, vector<1x32x33xf32>
    %18 = vector.shape_cast %17 : vector<1x32x33xf32> to vector<32x33xf32>
    %19 = vector.broadcast %15 : vector<1x33xf32> to vector<32x33xf32>
    %20 = arith.mulf %18, %19 : vector<32x33xf32>
    %cst_12 = arith.constant dense<0.000000e+00> : vector<32xf32>
    %21 = vector.multi_reduction <add>, %20, %cst_12 [1] : vector<32x33xf32> to vector<32xf32>
    %22 = vector.shape_cast %21 : vector<32xf32> to vector<32x1xf32>
    %23 = arith.negf %22 : vector<32x1xf32>
    %24 = math.exp %23 : vector<32x1xf32>
    %cst_13 = arith.constant 1.000000e+00 : f32
    %25 = vector.broadcast %cst_13 : f32 to vector<32x1xf32>
    %26 = arith.addf %25, %24 : vector<32x1xf32>
    %27 = arith.divf %25, %26 : vector<32x1xf32>
    %c1 = arith.constant 1 : index
    %c0_14 = arith.constant 0 : index
    %c0_15 = arith.constant 0 : index
    %28 = vector.load %arg5[%c1, %c0_14, %c0_15] : memref<2x32x33xf32, #tpu.memory_space<vmem>>, vector<1x32x33xf32>
    %29 = vector.shape_cast %28 : vector<1x32x33xf32> to vector<32x33xf32>
    %30 = vector.broadcast %16 : vector<1x33xf32> to vector<32x33xf32>
    %31 = arith.mulf %29, %30 : vector<32x33xf32>
    %cst_16 = arith.constant dense<0.000000e+00> : vector<32xf32>
    %32 = vector.multi_reduction <add>, %31, %cst_16 [1] : vector<32x33xf32> to vector<32xf32>
    %33 = vector.shape_cast %32 : vector<32xf32> to vector<32x1xf32>
    %34 = arith.negf %33 : vector<32x1xf32>
    %35 = math.exp %34 : vector<32x1xf32>
    %cst_17 = arith.constant 1.000000e+00 : f32
    %36 = vector.broadcast %cst_17 : f32 to vector<32x1xf32>
    %37 = arith.addf %36, %35 : vector<32x1xf32>
    %38 = arith.divf %36, %37 : vector<32x1xf32>
    %39 = arith.addf %27, %38 : vector<32x1xf32>
    %c0_18 = arith.constant 0 : index
    %c0_19 = arith.constant 0 : index
    %40 = vector.load %arg2[%c0_18, %c0_19] : memref<32x256xf32, #tpu.memory_space<vmem>>, vector<32x256xf32>
    %41 = vector.broadcast %39 : vector<32x1xf32> to vector<32x256xf32>
    %42 = arith.mulf %41, %40 : vector<32x256xf32>
    %43 = arith.addf %1, %42 : vector<32x256xf32>
    %c0_20 = arith.constant 0 : index
    %c0_21 = arith.constant 0 : index
    %c0_22 = arith.constant 0 : index
    %44 = vector.load %arg6[%c0_20, %c0_21, %c0_22] : memref<1x32x256xf32, #tpu.memory_space<vmem>>, vector<1x32x256xf32>
    %45 = vector.shape_cast %44 : vector<1x32x256xf32> to vector<32x256xf32>
    %46 = vector.shape_cast %43 : vector<32x256xf32> to vector<1x32x256xf32>
    tpu.vector_store %arg6[%c0_20, %c0_21, %c0_22], %46 {strides = array<i32>} : memref<1x32x256xf32, #tpu.memory_space<vmem>>, vector<1x32x256xf32>,
    return
  }
  func.func @transform_0(%arg0: i32) -> (i32, i32, i32) {
    %c0_i32 = arith.constant 0 : i32
    %c0_i32_0 = arith.constant 0 : i32
    %c0_i32_1 = arith.constant 0 : i32
    return %arg0, %c0_i32, %c0_i32_0 : i32, i32, i32
  }
  func.func @transform_1(%arg0: i32) -> (i32, i32) {
    %c0_i32 = arith.constant 0 : i32
    %c0_i32_0 = arith.constant 0 : i32
    %c0_i32_1 = arith.constant 0 : i32
    return %c0_i32, %c0_i32_0 : i32, i32
  }
  func.func @transform_2(%arg0: i32) -> (i32, i32) {
    %c0_i32 = arith.constant 0 : i32
    %c0_i32_0 = arith.constant 0 : i32
    %c0_i32_1 = arith.constant 0 : i32
    return %c0_i32, %c0_i32_0 : i32, i32
  }
  func.func @transform_3(%arg0: i32) -> (i32, i32) {
    %c0_i32 = arith.constant 0 : i32
    %c0_i32_0 = arith.constant 0 : i32
    %c0_i32_1 = arith.constant 0 : i32
    return %c0_i32, %c0_i32_0 : i32, i32
  }
  func.func @transform_4(%arg0: i32) -> (i32, i32, i32) {
    %c0_i32 = arith.constant 0 : i32
    %c0_i32_0 = arith.constant 0 : i32
    %c0_i32_1 = arith.constant 0 : i32
    %c0_i32_2 = arith.constant 0 : i32
    return %c0_i32, %c0_i32_0, %c0_i32_1 : i32, i32, i32
  }
  func.func @transform_5(%arg0: i32) -> (i32, i32, i32) {
    %c0_i32 = arith.constant 0 : i32
    %c0_i32_0 = arith.constant 0 : i32
    %c0_i32_1 = arith.constant 0 : i32
    return %arg0, %c0_i32, %c0_i32_0 : i32, i32, i32
  }
}

</mosaic_0001>

<llo_original>
// kernel: tpu_custom_call.1
$region0: #{tpu_custom_call.1}
  #allocation0 [shape = 'u32[]', space=smem, size = 0x4, offset = 0x4, fixed_abs, tag = 'smem constant byte address 0x4 - core index']
  #allocation1 [shape = 'u32[144,128]{1,0:T(1,128)}', space=vmem, size = 0x12000, scoped, tag = 'internal scratch']
  %s0 = inlined_call_operand.hbm [shape: f32[2,32,256], index: 0, kind: input, shape index: {}]
  %s1 = inlined_call_operand.hbm [shape: f32[32,256], index: 1, kind: input, shape index: {}]
  %s2 = inlined_call_operand.hbm [shape: f32[32,66], index: 2, kind: input, shape index: {}]
  %s3 = inlined_call_operand.vmem [shape: f32[1,66], index: 3, kind: input, shape index: {}]
  %s4 = inlined_call_operand.hbm [shape: f32[2,32,33], index: 4, kind: input, shape index: {}]
  %s5 = inlined_call_operand.hbm [shape: f32[2,32,256], index: 5, kind: output, shape index: {}]
  %s6 = sld [smem:[#allocation0]]
  $region69: #{tpu_custom_call.1} parent=0
    _
  %s8 = ssub.s32 1, %s6
  %s9 = scalar_select 0, %s8, %s6
  $region1: #{tpu_custom_call.1} parent=0
    #allocation2 [shape = 'u8[65536]{0}', space=vmem, size = 0x10000, scoped, tag = 'input window, operand 0']
    #allocation3 [shape = 's32[2]{0}', space=sflag, size = 0x8, scoped, tag = 'scoped memory for tpu_custom_call.1']
    #allocation4 [shape = 's32[2]{0}', space=sflag, size = 0x8, scoped, tag = 'scoped memory for tpu_custom_call.1']
    #allocation5 [shape = 'u8[32768]{0}', space=vmem, size = 0x8000, scoped, tag = 'input window, operand 1, single buffered']
    #allocation6 [shape = 's32[1]{0}', space=sflag, size = 0x4, scoped, tag = 'scoped memory for tpu_custom_call.1']
    #allocation7 [shape = 'u8[16384]{0}', space=vmem, size = 0x4000, scoped, tag = 'input window, operand 2, single buffered']
    #allocation8 [shape = 'u8[32768]{0}', space=vmem, size = 0x8000, scoped, tag = 'input window, operand 4, single buffered']
    #allocation9 [shape = 's32[1]{0}', space=sflag, size = 0x4, scoped, tag = 'scoped memory for tpu_custom_call.1']
    #allocation10 [shape = 'u8[65536]{0}', space=vmem, size = 0x10000, scoped, tag = 'output window, operand 0']
    %10 = vsyncpa [#allocation3], 0
    %s11 = scalar_lea.sflag [#allocation3], 1
    %12 = vsyncpa %s11, 0
    %13 = vsyncpa [#allocation6], 0
    %14 = vsyncpa [#allocation9], 0
    %15 = vsyncpa [#allocation4], 0
    %s16 = scalar_lea.sflag [#allocation4], 1
    %17 = vsyncpa %s16, 0
    loop: start=0, step=1, limit=4
    $region2: #{tpu_custom_call.1} parent=1 // loop_pre_header
      _
    $region3: #{tpu_custom_call.1} parent=1 // loop_header
      %s19 = sphi 0, %s23
      %p20 = scmp.ge.s32.totalorder %s19, 4
      %s29 = sphi 0, %s31
      %s32 = sphi 0, %s29
      %s33 = sphi 0, %s32
      %s49 = sphi 0, %s33
      %s53 = sphi 0, %s53
      %s55 = sphi 0, %s53
      %s56 = sphi 0, %s55
      %s70 = sphi 0, %s56
      %s74 = sphi 0, %s74
      %s76 = sphi 0, %s74
      %s77 = sphi 0, %s76
      %s91 = sphi 0, %s77
      %s95 = sphi 0, %s95
      %s97 = sphi 0, %s95
      %s98 = sphi 0, %s97
      %s112 = sphi 0, %s98
      %s116 = sphi 0, %s116
      %s118 = sphi 0, %s116
      %s119 = sphi 0, %s118
      %s133 = sphi 0, %s119
      %s139 = sphi 0, %s141
      %s142 = sphi 0, %s139
      %s143 = sphi 0, %s142
      %s159 = sphi 0, %s143
    $region4: #{tpu_custom_call.1} parent=1 // loop_header_branch
      %22 = sbr.rel (%p20) target = $region8
    $region5: #{tpu_custom_call.1} parent=1 // loop_body
      %s24 = ssub.s32 %s19, 1
      %s25 = ssub.s32 %s19, 2
      %s26 = sadd.s32 %s19, 1
      %s27 = ssub.s32 %s19, %s26
      %p28 = scmp.eq.s32.totalorder %s27, 0
      %s30 = sadd.s32 %s29, 1
      %s31 = scalar_select %p28, %s29, %s30
      %p34 = pneg %p28
      %p35 = scmp.eq.s32.totalorder %s19, 1
      %p36 = por %p34, %p35
      %p37 = scmp.ne.s32.totalorder %s29, %s32
      %p38 = scmp.eq.s32.totalorder %s19, 0
      %p39 = por %p37, %p38
      %p40 = scmp.ne.s32.totalorder %s29, %s32
      %p41 = scmp.eq.s32.totalorder %s24, 1
      %p42 = por %p40, %p41
      %p43 = scmp.ne.s32.totalorder %s32, %s33
      %p44 = scmp.eq.s32.totalorder %s24, 0
      %p45 = por %p43, %p44
      %p46 = scmp.ne.s32.totalorder %s32, %s33
      %p47 = scmp.eq.s32.totalorder %s25, 1
      %p48 = por %p46, %p47
      %p50 = scmp.ne.s32.totalorder %s33, %s49
      %p51 = scmp.eq.s32.totalorder %s25, 0
      %p52 = por %p50, %p51
      %s54 = sadd.s32 %s53, 1
      %p57 = scmp.eq.s32.totalorder %s19, 1
      %p58 = scmp.ne.s32.totalorder %s53, %s55
      %p59 = scmp.eq.s32.totalorder %s19, 0
      %p60 = por %p58, %p59
      %p61 = scmp.ne.s32.totalorder %s53, %s55
      %p62 = scmp.eq.s32.totalorder %s24, 1
      %p63 = por %p61, %p62
      %p64 = scmp.ne.s32.totalorder %s55, %s56
      %p65 = scmp.eq.s32.totalorder %s24, 0
      %p66 = por %p64, %p65
      %p67 = scmp.ne.s32.totalorder %s55, %s56
      %p68 = scmp.eq.s32.totalorder %s25, 1
      %p69 = por %p67, %p68
      %p71 = scmp.ne.s32.totalorder %s56, %s70
      %p72 = scmp.eq.s32.totalorder %s25, 0
      %p73 = por %p71, %p72
      %s75 = sadd.s32 %s74, 1
      %p78 = scmp.eq.s32.totalorder %s19, 1
      %p79 = scmp.ne.s32.totalorder %s74, %s76
      %p80 = scmp.eq.s32.totalorder %s19, 0
      %p81 = por %p79, %p80
      %p82 = scmp.ne.s32.totalorder %s74, %s76
      %p83 = scmp.eq.s32.totalorder %s24, 1
      %p84 = por %p82, %p83
      %p85 = scmp.ne.s32.totalorder %s76, %s77
      %p86 = scmp.eq.s32.totalorder %s24, 0
      %p87 = por %p85, %p86
      %p88 = scmp.ne.s32.totalorder %s76, %s77
      %p89 = scmp.eq.s32.totalorder %s25, 1
      %p90 = por %p88, %p89
      %p92 = scmp.ne.s32.totalorder %s77, %s91
      %p93 = scmp.eq.s32.totalorder %s25, 0
      %p94 = por %p92, %p93
      %s96 = sadd.s32 %s95, 1
      %p99 = scmp.eq.s32.totalorder %s19, 1
      %p100 = scmp.ne.s32.totalorder %s95, %s97
      %p101 = scmp.eq.s32.totalorder %s19, 0
      %p102 = por %p100, %p101
      %p103 = scmp.ne.s32.totalorder %s95, %s97
      %p104 = scmp.eq.s32.totalorder %s24, 1
      %p105 = por %p103, %p104
      %p106 = scmp.ne.s32.totalorder %s97, %s98
      %p107 = scmp.eq.s32.totalorder %s24, 0
      %p108 = por %p106, %p107
      %p109 = scmp.ne.s32.totalorder %s97, %s98
      %p110 = scmp.eq.s32.totalorder %s25, 1
      %p111 = por %p109, %p110
      %p113 = scmp.ne.s32.totalorder %s98, %s112
      %p114 = scmp.eq.s32.totalorder %s25, 0
      %p115 = por %p113, %p114
      %s117 = sadd.s32 %s116, 1
      %p120 = scmp.eq.s32.totalorder %s19, 1
      %p121 = scmp.ne.s32.totalorder %s116, %s118
      %p122 = scmp.eq.s32.totalorder %s19, 0
      %p123 = por %p121, %p122
      %p124 = scmp.ne.s32.totalorder %s116, %s118
      %p125 = scmp.eq.s32.totalorder %s24, 1
      %p126 = por %p124, %p125
      %p127 = scmp.ne.s32.totalorder %s118, %s119
      %p128 = scmp.eq.s32.totalorder %s24, 0
      %p129 = por %p127, %p128
      %p130 = scmp.ne.s32.totalorder %s118, %s119
      %p131 = scmp.eq.s32.totalorder %s25, 1
      %p132 = por %p130, %p131
      %p134 = scmp.ne.s32.totalorder %s119, %s133
      %p135 = scmp.eq.s32.totalorder %s25, 0
      %p136 = por %p134, %p135
      %s137 = ssub.s32 %s19, %s26
      %p138 = scmp.eq.s32.totalorder %s137, 0
      %s140 = sadd.s32 %s139, 1
      %s141 = scalar_select %p138, %s139, %s140
      %p144 = pneg %p138
      %p145 = scmp.eq.s32.totalorder %s19, 1
      %p146 = por %p144, %p145
      %p147 = scmp.ne.s32.totalorder %s139, %s142
      %p148 = scmp.eq.s32.totalorder %s19, 0
      %p149 = por %p147, %p148
      %p150 = scmp.ne.s32.totalorder %s139, %s142
      %p151 = scmp.eq.s32.totalorder %s24, 1
      %p152 = por %p150, %p151
      %p153 = scmp.ne.s32.totalorder %s142, %s143
      %p154 = scmp.eq.s32.totalorder %s24, 0
      %p155 = por %p153, %p154
      %p156 = scmp.ne.s32.totalorder %s142, %s143
      %p157 = scmp.eq.s32.totalorder %s25, 1
      %p158 = por %p156, %p157
      %p160 = scmp.ne.s32.totalorder %s143, %s159
      %p161 = scmp.eq.s32.totalorder %s25, 0
      %p162 = por %p160, %p161
      %p163 = scmp.le.s32.totalorder 1, %s19
      %p164 = scmp.lt.s32.totalorder %s19, 3
      %p165 = pnand %p163, %p164
      %p166 = pneg %p165
      // Predicated region
      $region9: #{tpu_custom_call.1} parent=5 // pred_check
        _
      $region10: #{tpu_custom_call.1} parent=5 // pred_check_branch
        %168 = sbr.rel (%p165) target = $region12
      $region11: #{tpu_custom_call.1} parent=5 // pred_region
        %s169 = ssub.s32 %s19, 1
        // Predicated region
        $region13: #{tpu_custom_call.1} parent=11 // pred_check
          %p170 = pneg %p66
        $region14: #{tpu_custom_call.1} parent=11 // pred_check_branch
          %172 = sbr.rel (%p170) target = $region16
        $region15: #{tpu_custom_call.1} parent=11 // pred_region
          %s174 = ssub.s32 1024, 1024
          %175 = vsyncadd [#allocation6], %s174
          %s176 = sshll.u32 [#allocation5], 4
          %s177 = int_to_ptr.vmem [resolvable:$true] %s176
          %182 = dma.hbm_to_vmem [thread:$0]  %s1, 1024, %s177, [#allocation6], 256, 256, 16
        $region16: #{tpu_custom_call.1} parent=11 // pred_fallthru
          _
        // Predicated region
        $region17: #{tpu_custom_call.1} parent=11 // pred_check
          %p183 = pneg %p87
        $region18: #{tpu_custom_call.1} parent=11 // pred_check_branch
          %185 = sbr.rel (%p183) target = $region20
        $region19: #{tpu_custom_call.1} parent=11 // pred_region
          %s187 = ssub.s32 512, 512
          %188 = vsyncadd [#allocation6], %s187
          %s189 = sshll.u32 [#allocation7], 4
          %s190 = int_to_ptr.vmem [resolvable:$true] %s189
          %195 = dma.hbm_to_vmem [thread:$0]  %s2, 512, %s190, [#allocation6], 128, 128, 8
        $region20: #{tpu_custom_call.1} parent=11 // pred_fallthru
          _
        // Predicated region
        $region21: #{tpu_custom_call.1} parent=11 // pred_check
          %p196 = pneg %p108
        $region22: #{tpu_custom_call.1} parent=11 // pred_check_branch
          %198 = sbr.rel (%p196) target = $region24
        $region23: #{tpu_custom_call.1} parent=11 // pred_region
          _
        $region24: #{tpu_custom_call.1} parent=11 // pred_fallthru
          _
        // Predicated region
        $region25: #{tpu_custom_call.1} parent=11 // pred_check
          %p199 = pneg %p129
        $region26: #{tpu_custom_call.1} parent=11 // pred_check_branch
          %201 = sbr.rel (%p199) target = $region28
        $region27: #{tpu_custom_call.1} parent=11 // pred_region
          %s203 = ssub.s32 1024, 1024
          %204 = vsyncadd [#allocation9], %s203
          %s205 = sshll.u32 [#allocation8], 4
          %s206 = int_to_ptr.vmem [resolvable:$true] %s205
          %211 = dma.hbm_to_vmem [thread:$0]  %s4, 1024, %s206, [#allocation9], 128, 128, 8
        $region28: #{tpu_custom_call.1} parent=11 // pred_fallthru
          _
      $region12: #{tpu_custom_call.1} parent=5 // pred_fallthru
        _
      %p212 = scmp.lt.s32.totalorder %s19, 2
      // Predicated region
      $region29: #{tpu_custom_call.1} parent=5 // pred_check
        %p213 = pneg %p212
      $region30: #{tpu_custom_call.1} parent=5 // pred_check_branch
        %215 = sbr.rel (%p213) target = $region32
      $region31: #{tpu_custom_call.1} parent=5 // pred_region
        // Predicated region
        $region33: #{tpu_custom_call.1} parent=31 // pred_check
          %p216 = pneg %p39
        $region34: #{tpu_custom_call.1} parent=31 // pred_check_branch
          %218 = sbr.rel (%p216) target = $region36
        $region35: #{tpu_custom_call.1} parent=31 // pred_region
          %s219 = sand.u32 %s29, 1
          %s220 = scalar_lea.sflag [#allocation3], %s219
          %s221 = sand.u32 %s29, 1
          %s222 = smul.addr %s221, 64
          %s223 = scalar_lea.vmem [#allocation2], %s222
          %s225 = ssub.s32 1024, 1024
          %226 = vsyncadd %s220, %s225
          %s227 = smul.addr %s19, 8
          %s228 = smul.addr %s227, 128
          %s229 = scalar_lea.hbm %s0, %s228
          %s230 = sshll.u32 %s223, 4
          %s231 = int_to_ptr.vmem [resolvable:$true] %s230
          %236 = dma.hbm_to_vmem [thread:$0]  %s229, 1024, %s231, %s220, 256, 256, 16
        $region36: #{tpu_custom_call.1} parent=31 // pred_fallthru
          _
      $region32: #{tpu_custom_call.1} parent=5 // pred_fallthru
        _
      %p237 = scmp.le.s32.totalorder 1, %s19
      %p238 = scmp.lt.s32.totalorder %s19, 3
      %p239 = pnand %p237, %p238
      %p240 = pneg %p239
      // Predicated region
      $region37: #{tpu_custom_call.1} parent=5 // pred_check
        _
      $region38: #{tpu_custom_call.1} parent=5 // pred_check_branch
        %242 = sbr.rel (%p239) target = $region40
      $region39: #{tpu_custom_call.1} parent=5 // pred_region
        %s243 = ssub.s32 %s19, 1
        %s244 = sand.u32 %s32, 1
        %s245 = scalar_lea.sflag [#allocation3], %s244
        %s246 = sand.u32 %s32, 1
        %s247 = smul.addr %s246, 64
        %s248 = scalar_lea.vmem [#allocation2], %s247
        // Predicated region
        $region41: #{tpu_custom_call.1} parent=39 // pred_check
          %p249 = pneg %p45
        $region42: #{tpu_custom_call.1} parent=39 // pred_check_branch
          %251 = sbr.rel (%p249) target = $region44
        $region43: #{tpu_custom_call.1} parent=39 // pred_region
          %252 = dma.done %s245, 1024
        $region44: #{tpu_custom_call.1} parent=39 // pred_fallthru
          _
        // Predicated region
        $region45: #{tpu_custom_call.1} parent=39 // pred_check
          %p253 = pneg %p66
        $region46: #{tpu_custom_call.1} parent=39 // pred_check_branch
          %255 = sbr.rel (%p253) target = $region48
        $region47: #{tpu_custom_call.1} parent=39 // pred_region
          %256 = dma.done [#allocation6], 1024
        $region48: #{tpu_custom_call.1} parent=39 // pred_fallthru
          _
        // Predicated region
        $region49: #{tpu_custom_call.1} parent=39 // pred_check
          %p257 = pneg %p87
        $region50: #{tpu_custom_call.1} parent=39 // pred_check_branch
          %259 = sbr.rel (%p257) target = $region52
        $region51: #{tpu_custom_call.1} parent=39 // pred_region
          %260 = dma.done [#allocation6], 512
        $region52: #{tpu_custom_call.1} parent=39 // pred_fallthru
          _
        // Predicated region
        $region53: #{tpu_custom_call.1} parent=39 // pred_check
          %p261 = pneg %p129
        $region54: #{tpu_custom_call.1} parent=39 // pred_check_branch
          %263 = sbr.rel (%p261) target = $region56
        $region55: #{tpu_custom_call.1} parent=39 // pred_region
          %264 = dma.done [#allocation9], 1024
        $region56: #{tpu_custom_call.1} parent=39 // pred_fallthru
          _
        %s265 = sand.u32 %s32, 1
        %s266 = scalar_lea.sflag [#allocation3], %s265
        %s267 = sand.u32 %s32, 1
        %s268 = smul.addr %s267, 64
        %s269 = scalar_lea.vmem [#allocation2], %s268
        %p270 = pneg %p45
        %p271 = pneg %p42
        %p272 = pneg %p66
        %p273 = pneg %p63
        %p274 = pneg %p87
        %p275 = pneg %p84
        %p276 = pneg %p108
        %p277 = pneg %p105
        %p278 = pneg %p129
        %p279 = pneg %p126
        %p280 = pneg %p155
        %p281 = pneg %p152
        %s282 = sand.u32 %s142, 1
        %s283 = scalar_lea.sflag [#allocation4], %s282
        %s284 = sand.u32 %s142, 1
        %s285 = smul.addr %s284, 64
        %s286 = scalar_lea.vmem [#allocation10], %s285
        %v287 = vld [vmem:[%s248] sm:$0xff]
        %v288 = vld [vmem:[%s248 + $0x8] sm:$0xff]
        %v289 = vld [vmem:[%s248 + $0x10] sm:$0xff]
        %v290 = vld [vmem:[%s248 + $0x18] sm:$0xff]
        %v291 = vld [vmem:[%s248 + $0x20] sm:$0xff]
        %v292 = vld [vmem:[%s248 + $0x28] sm:$0xff]
        %v293 = vld [vmem:[%s248 + $0x30] sm:$0xff]
        %v294 = vld [vmem:[%s248 + $0x38] sm:$0xff]
        %v295 = vadd.f32 %v287, %v288
        %296 = vadd.xlane.f32.xlu0 %v295
        %v297 = vpop.xlane.xlu0 %296
        %v298 = vadd.f32 %v289, %v290
        %299 = vadd.xlane.f32.xlu0 %v298
        %v300 = vpop.xlane.xlu0 %299
        %v301 = vadd.f32 %v291, %v292
        %302 = vadd.xlane.f32.xlu0 %v301
        %v303 = vpop.xlane.xlu0 %302
        %v304 = vadd.f32 %v293, %v294
        %305 = vadd.xlane.f32.xlu0 %v304
        %v306 = vpop.xlane.xlu0 %305
        %v307 = vmul.f32 %v297, 0.00390625
        %v308 = vmul.f32 %v300, 0.00390625
        %v309 = vmul.f32 %v303, 0.00390625
        %v310 = vmul.f32 %v306, 0.00390625
        %v311 = vld [vmem:[#allocation7] sm:$0xff]
        %v312 = vld [vmem:[#allocation7 + $0x8] sm:$0xff]
        %v313 = vld [vmem:[#allocation7 + $0x10] sm:$0xff]
        %v314 = vld [vmem:[#allocation7 + $0x18] sm:$0xff]
        %v315 = vmul.f32 %v311, %v307
        %v316 = vmul.f32 %v312, %v308
        %v317 = vmul.f32 %v313, %v309
        %v318 = vmul.f32 %v314, %v310
        %vm319 = vcmask 539648
        %v320 = vsel %vm319, %v315, 0.0
        %v321 = vsel %vm319, %v316, 0.0
        %v322 = vadd.f32 %v320, %v321
        %v323 = vsel %vm319, %v317, 0.0
        %v324 = vadd.f32 %v322, %v323
        %v325 = vsel %vm319, %v318, 0.0
        %v326 = vadd.f32 %v324, %v325
        %v327 = vrot.slane %v326, 4
        %v328 = vadd.f32 %v326, %v327
        %v329 = vrot.slane %v328, 2
        %v330 = vadd.f32 %v328, %v329
        %v331 = vrot.slane %v330, 1
        %v332 = vadd.f32 %v330, %v331
        %v333 = vld [vmem:[%s3] sm:$0x1]
        %v334 = vadd.f32 %v332, %v333
        %v335 = vmax.f32 %v334, 0.0
        %v336 = vld [vmem:[#allocation8] sm:$0xff]
        %v337 = vld [vmem:[#allocation8 + $0x8] sm:$0xff]
        %v338 = vld [vmem:[#allocation8 + $0x10] sm:$0xff]
        %v339 = vld [vmem:[#allocation8 + $0x18] sm:$0xff]
        %v340 = vlaneseq
        %v341 = vshrl.u32 %v340, 7
        %v342 = vsub.s32 0, %v341
        %v343 = vrot.slane %v335, %v342
        %v344 = vmul.f32 %v336, %v343
        %v345 = vmul.f32 %v337, %v343
        %v346 = vmul.f32 %v338, %v343
        %v347 = vmul.f32 %v339, %v343
        %vm348 = vcmask 269312
        %v349 = vsel %vm348, %v344, 0.0
        %350 = vadd.xlane.f32.xlu0 %v349
        %v351 = vpop.xlane.xlu0 %350
        %v352 = vsel %vm348, %v345, 0.0
        %353 = vadd.xlane.f32.xlu0 %v352
        %v354 = vpop.xlane.xlu0 %353
        %v355 = vsel %vm348, %v346, 0.0
        %356 = vadd.xlane.f32.xlu0 %v355
        %v357 = vpop.xlane.xlu0 %356
        %v358 = vsel %vm348, %v347, 0.0
        %359 = vadd.xlane.f32.xlu0 %v358
        %v360 = vpop.xlane.xlu0 %359
        %v361 = vxor.u32 %v351, 2147483648
        %v362 = vxor.u32 %v354, 2147483648
        %v363 = vxor.u32 %v357, 2147483648
        %v364 = vxor.u32 %v360, 2147483648
        %v365 = vmul.f32 %v361, 1.442695
        %v366 = vpow.pop %v365
        %v367 = vmul.f32 %v362, 1.442695
        %v368 = vpow.pop %v367
        %v369 = vmul.f32 %v363, 1.442695
        %v370 = vpow.pop %v369
        %v371 = vmul.f32 %v364, 1.442695
        %v372 = vpow.pop %v371
        %v373 = vadd.f32 %v366, 1.0
        %v374 = vadd.f32 %v368, 1.0
        %v375 = vadd.f32 %v370, 1.0
        %v376 = vadd.f32 %v372, 1.0
        %v377 = vrcp.pop %v373
        %v378 = vmul.f32 1.0, %v377
        %v379 = vrcp.pop %v374
        %v380 = vmul.f32 1.0, %v379
        %v381 = vrcp.pop %v375
        %v382 = vmul.f32 1.0, %v381
        %v383 = vrcp.pop %v376
        %v384 = vmul.f32 1.0, %v383
        %s385 = scalar_lea.vmem [#allocation8], 32
        %v386 = vld [vmem:[%s385] sm:$0xff]
        %v387 = vld [vmem:[%s385 + $0x8] sm:$0xff]
        %v388 = vld [vmem:[%s385 + $0x10] sm:$0xff]
        %v389 = vld [vmem:[%s385 + $0x18] sm:$0xff]
        %391 = vrot.lane.b32.xlu0 %v343, 95
        %v392 = vpop.permute.xlu0 %391
        %v394 = vmul.f32 %v386, %v392
        %v395 = vmul.f32 %v387, %v392
        %v396 = vmul.f32 %v388, %v392
        %v397 = vmul.f32 %v389, %v392
        %v398 = vsel %vm348, %v394, 0.0
        %399 = vadd.xlane.f32.xlu0 %v398
        %v400 = vpop.xlane.xlu0 %399
        %v401 = vsel %vm348, %v395, 0.0
        %402 = vadd.xlane.f32.xlu0 %v401
        %v403 = vpop.xlane.xlu0 %402
        %v404 = vsel %vm348, %v396, 0.0
        %405 = vadd.xlane.f32.xlu0 %v404
        %v406 = vpop.xlane.xlu0 %405
        %v407 = vsel %vm348, %v397, 0.0
        %408 = vadd.xlane.f32.xlu0 %v407
        %v409 = vpop.xlane.xlu0 %408
        %v410 = vxor.u32 %v400, 2147483648
        %v411 = vxor.u32 %v403, 2147483648
        %v412 = vxor.u32 %v406, 2147483648
        %v413 = vxor.u32 %v409, 2147483648
        %v414 = vmul.f32 %v410, 1.442695
        %v415 = vpow.pop %v414
        %v416 = vmul.f32 %v411, 1.442695
        %v417 = vpow.pop %v416
        %v418 = vmul.f32 %v412, 1.442695
        %v419 = vpow.pop %v418
        %v420 = vmul.f32 %v413, 1.442695
        %v421 = vpow.pop %v420
        %v422 = vadd.f32 %v415, 1.0
        %v423 = vadd.f32 %v417, 1.0
        %v424 = vadd.f32 %v419, 1.0
        %v425 = vadd.f32 %v421, 1.0
        %v426 = vrcp.pop %v422
        %v427 = vmul.f32 1.0, %v426
        %v428 = vrcp.pop %v423
        %v429 = vmul.f32 1.0, %v428
        %v430 = vrcp.pop %v424
        %v431 = vmul.f32 1.0, %v430
        %v432 = vrcp.pop %v425
        %v433 = vmul.f32 1.0, %v432
        %v434 = vadd.f32 %v378, %v427
        %v435 = vadd.f32 %v380, %v429
        %v436 = vadd.f32 %v382, %v431
        %v437 = vadd.f32 %v384, %v433
        %v438 = vld [vmem:[#allocation5] sm:$0xff]
        %v439 = vld [vmem:[#allocation5 + $0x8] sm:$0xff]
        %v440 = vld [vmem:[#allocation5 + $0x10] sm:$0xff]
        %v441 = vld [vmem:[#allocation5 + $0x18] sm:$0xff]
        %v442 = vld [vmem:[#allocation5 + $0x20] sm:$0xff]
        %v443 = vld [vmem:[#allocation5 + $0x28] sm:$0xff]
        %v444 = vld [vmem:[#allocation5 + $0x30] sm:$0xff]
        %v445 = vld [vmem:[#allocation5 + $0x38] sm:$0xff]
        %v446 = vmul.f32 %v434, %v438
        %v447 = vmul.f32 %v434, %v439
        %v448 = vmul.f32 %v435, %v440
        %v449 = vmul.f32 %v435, %v441
        %v450 = vmul.f32 %v436, %v442
        %v451 = vmul.f32 %v436, %v443
        %v452 = vmul.f32 %v437, %v444
        %v453 = vmul.f32 %v437, %v445
        %v454 = vadd.f32 %v287, %v446
        %v455 = vadd.f32 %v288, %v447
        %v456 = vadd.f32 %v289, %v448
        %v457 = vadd.f32 %v290, %v449
        %v458 = vadd.f32 %v291, %v450
        %v459 = vadd.f32 %v292, %v451
        %v460 = vadd.f32 %v293, %v452
        %v461 = vadd.f32 %v294, %v453
        %462 = vst [vmem:[%s286] sm:$0xff] %v454
        %463 = vst [vmem:[%s286 + $0x8] sm:$0xff] %v455
        %464 = vst [vmem:[%s286 + $0x10] sm:$0xff] %v456
        %465 = vst [vmem:[%s286 + $0x18] sm:$0xff] %v457
        %466 = vst [vmem:[%s286 + $0x20] sm:$0xff] %v458
        %467 = vst [vmem:[%s286 + $0x28] sm:$0xff] %v459
        %468 = vst [vmem:[%s286 + $0x30] sm:$0xff] %v460
        %469 = vst [vmem:[%s286 + $0x38] sm:$0xff] %v461
        %s470 = sand.u32 %s142, 1
        %s471 = scalar_lea.sflag [#allocation4], %s470
        %s472 = sand.u32 %s142, 1
        %s473 = smul.addr %s472, 64
        %s474 = scalar_lea.vmem [#allocation10], %s473
        // Predicated region
        $region57: #{tpu_custom_call.1} parent=39 // pred_check
          %p475 = pneg %p152
        $region58: #{tpu_custom_call.1} parent=39 // pred_check_branch
          %477 = sbr.rel (%p475) target = $region60
        $region59: #{tpu_custom_call.1} parent=39 // pred_region
          %s479 = ssub.s32 1024, 1024
          %480 = vsyncadd %s471, %s479
          %s481 = smul.addr %s24, 8
          %s482 = smul.addr %s481, 128
          %s483 = scalar_lea.hbm %s5, %s482
          %s484 = sshll.u32 %s474, 4
          %s485 = int_to_ptr.vmem [resolvable:$true] %s484
          %490 = dma.vmem_to_hbm [thread:$0]  %s485, 1024, %s483, %s471, 256, 256, 16
        $region60: #{tpu_custom_call.1} parent=39 // pred_fallthru
          _
      $region40: #{tpu_custom_call.1} parent=5 // pred_fallthru
        _
      %p491 = scmp.le.s32.totalorder 2, %s19
      // Predicated region
      $region61: #{tpu_custom_call.1} parent=5 // pred_check
        %p492 = pneg %p491
      $region62: #{tpu_custom_call.1} parent=5 // pred_check_branch
        %494 = sbr.rel (%p492) target = $region64
      $region63: #{tpu_custom_call.1} parent=5 // pred_region
        %s495 = ssub.s32 %s19, 2
        // Predicated region
        $region65: #{tpu_custom_call.1} parent=63 // pred_check
          %p496 = pneg %p158
        $region66: #{tpu_custom_call.1} parent=63 // pred_check_branch
          %498 = sbr.rel (%p496) target = $region68
        $region67: #{tpu_custom_call.1} parent=63 // pred_region
          %s499 = sand.u32 %s143, 1
          %s500 = scalar_lea.sflag [#allocation4], %s499
          %s501 = sand.u32 %s143, 1
          %s502 = smul.addr %s501, 64
          %s503 = scalar_lea.vmem [#allocation10], %s502
          %504 = dma.done %s500, 1024
        $region68: #{tpu_custom_call.1} parent=63 // pred_fallthru
          _
      $region64: #{tpu_custom_call.1} parent=5 // pred_fallthru
        _
    $region6: #{tpu_custom_call.1} parent=1 // loop_footer
      %s23 = sadd.s32 1, %s19
    $region7: #{tpu_custom_call.1} parent=1 // loop_footer_branch
      %18 = sbr.rel target = $region3
    $region8: #{tpu_custom_call.1} parent=1 // loop_exit
      _
    %505 = vsyncpa [#allocation3], 1
    %s506 = scalar_lea.sflag [#allocation3], 1
    %507 = vsyncpa %s506, 1
    %508 = vsyncpa [#allocation6], 1
    %509 = vsyncpa [#allocation9], 1
    %510 = vsyncpa [#allocation4], 1
    %s511 = scalar_lea.sflag [#allocation4], 1
    %512 = vsyncpa %s511, 1

</llo_original>
